<compile_context>
chip_gen: v7x
topology: tpu7x:2x2x1
jax: 0.10.0
libtpu: 0.0.40
codegen_flags: <defaults>
</compile_context>

<pallas_src>
import functools
import math

import numpy as np
import jax
import jax.numpy as jnp
from jax.experimental import pallas as pl
from jax.experimental.pallas import tpu as pltpu

_LANE = 128
_VMEM_LIMIT = 32 * 1024 * 1024
_INV_SQRT2 = 0.7071067811865476


def _round_up(x, m):
    return ((x + m - 1) // m) * m


def _pick_tile(dim, candidates):
    for c in candidates:
        if dim % c == 0:
            return c
    return dim


# ----------------------------------------------------------------------------
# Pallas kernel 1: tiled GEMM with fused epilogues (bias / GELU / mask-mix)
# ----------------------------------------------------------------------------
def _make_gemm_kernel(has_bias, apply_gelu, with_mix):
    def kernel(*args):
        x_ref, w_ref = args[0], args[1]
        p = 2
        b_ref = None
        if has_bias:
            b_ref = args[p]
            p += 1
        if with_mix:
            mask_ref, xorig_ref = args[p], args[p + 1]
            p += 2
        o_ref = args[p]
        p += 1
        imp_ref = None
        if with_mix:
            imp_ref = args[p]
            p += 1
        acc_ref = args[p]

        k = pl.program_id(2)

        @pl.when(k == 0)
        def _init():
            acc_ref[...] = jnp.zeros_like(acc_ref)

        acc_ref[...] += jnp.dot(x_ref[...], w_ref[...],
                                preferred_element_type=jnp.float32)

        @pl.when(k == pl.num_programs(2) - 1)
        def _finalize():
            y = acc_ref[...]
            if has_bias:
                y = y + b_ref[...]
            if apply_gelu:  # exact erf GELU, matching torch.nn.GELU() default
                y = 0.5 * y * (1.0 + jax.lax.erf(y * _INV_SQRT2))
            o_ref[...] = y.astype(o_ref.dtype)
            if with_mix:
                m = mask_ref[...]
                imp_ref[...] = (m * xorig_ref[...] + (1.0 - m) * y).astype(imp_ref.dtype)

    return kernel


def fused_matmul(x, w, bias=None, *, apply_gelu=False, mix=None):
    """(M,K) @ (K,N) [+bias] [GELU] [mask-mix] — bf16 MXU inputs, f32 accumulate."""
    M, K = x.shape
    Kw, N = w.shape
    assert K == Kw
    Kp, Np = _round_up(K, _LANE), _round_up(N, _LANE)
    Mp = _round_up(M, 16)
    if Mp > 256:
        Mp = _round_up(Mp, 256)
        tm = 256
    else:
        tm = Mp
    tk = _pick_tile(Kp, (512, 384, 256, 128))
    tn = _pick_tile(Np, (256, 128))

    xp = jnp.pad(x, ((0, Mp - M), (0, Kp - K))) if (Mp != M or Kp != K) else x
    wp = jnp.pad(w, ((0, Kp - K), (0, Np - N))) if (Kp != K or Np != N) else w

    in_arrays = [xp.astype(jnp.bfloat16), wp.astype(jnp.bfloat16)]
    in_specs = [pl.BlockSpec((tm, tk), lambda i, j, k: (i, k)),
                pl.BlockSpec((tk, tn), lambda i, j, k: (k, j))]
    if bias is not None:
        bp = jnp.pad(bias, (0, Np - N)) if Np != N else bias
        in_arrays.append(bp.reshape(1, Np).astype(jnp.float32))
        in_specs.append(pl.BlockSpec((1, tn), lambda i, j, k: (0, j)))
    with_mix = mix is not None
    if with_mix:
        mask2d, xorig2d = mix

        def _pad_mn(a):
            if Mp != M or a.shape[1] != Np:
                return jnp.pad(a, ((0, Mp - M), (0, Np - a.shape[1])))
            return a

        in_arrays += [_pad_mn(mask2d).astype(jnp.float32),
                      _pad_mn(xorig2d).astype(jnp.float32)]
        in_specs += [pl.BlockSpec((tm, tn), lambda i, j, k: (i, j)),
                     pl.BlockSpec((tm, tn), lambda i, j, k: (i, j))]

    out_spec = pl.BlockSpec((tm, tn), lambda i, j, k: (i, j))
    if with_mix:
        out_shape = (jax.ShapeDtypeStruct((Mp, Np), jnp.float32),
                     jax.ShapeDtypeStruct((Mp, Np), jnp.float32))
        out_specs = (out_spec, out_spec)
    else:
        out_shape = jax.ShapeDtypeStruct((Mp, Np), jnp.float32)
        out_specs = out_spec

    result = pl.pallas_call(
        _make_gemm_kernel(bias is not None, apply_gelu, with_mix),
        grid=(Mp // tm, Np // tn, Kp // tk),
        in_specs=in_specs,
        out_specs=out_specs,
        out_shape=out_shape,
        scratch_shapes=[pltpu.VMEM((tm, tn), jnp.float32)],
        compiler_params=pltpu.CompilerParams(
            dimension_semantics=("parallel", "parallel", "arbitrary"),
            vmem_limit_bytes=_VMEM_LIMIT),
    )(*in_arrays)

    if with_mix:
        o, imp = result
        return o[:M, :N], imp[:M, :N]
    return result[:M, :N]


# ----------------------------------------------------------------------------
# Pallas kernel 2: fused residual-add + LayerNorm (padding-lane aware)
# ----------------------------------------------------------------------------
def _make_ln_kernel(d_real):
    inv_d = 1.0 / float(d_real)

    def kernel(y_ref, x_ref, g_ref, b_ref, o_ref):
        v = y_ref[...] + x_ref[...]                        # fused residual add
        lane = jax.lax.broadcasted_iota(jnp.int32, v.shape, 1)
        msk = (lane < d_real).astype(jnp.float32)          # ignore channel padding
        mu = jnp.sum(v * msk, axis=-1, keepdims=True) * inv_d
        vc = (v - mu) * msk
        var = jnp.sum(vc * vc, axis=-1, keepdims=True) * inv_d
        o_ref[...] = vc * jax.lax.rsqrt(var + 1e-5) * g_ref[...] + b_ref[...]

    return kernel


def layer_norm_residual(y2d, x2d, gamma_pad, beta_pad, d_real):
    M, Dp = y2d.shape
    Mp = _round_up(M, 8)
    if Mp > 256:
        Mp = _round_up(Mp, 256)
        tm = 256
    else:
        tm = Mp
    yp = jnp.pad(y2d, ((0, Mp - M), (0, 0))) if Mp != M else y2d
    xp = jnp.pad(x2d, ((0, Mp - M), (0, 0))) if Mp != M else x2d
    out = pl.pallas_call(
        _make_ln_kernel(d_real),
        grid=(Mp // tm,),
        in_specs=[pl.BlockSpec((tm, Dp), lambda i: (i, 0)),
                  pl.BlockSpec((tm, Dp), lambda i: (i, 0)),
                  pl.BlockSpec((1, Dp), lambda i: (0, 0)),
                  pl.BlockSpec((1, Dp), lambda i: (0, 0))],
        out_specs=pl.BlockSpec((tm, Dp), lambda i: (i, 0)),
        out_shape=jax.ShapeDtypeStruct((Mp, Dp), jnp.float32),
        compiler_params=pltpu.CompilerParams(
            dimension_semantics=("parallel",),
            vmem_limit_bytes=_VMEM_LIMIT),
    )(yp.astype(jnp.float32), xp.astype(jnp.float32),
      gamma_pad.reshape(1, Dp).astype(jnp.float32),
      beta_pad.reshape(1, Dp).astype(jnp.float32))
    return out[:M]


# ----------------------------------------------------------------------------
# Model glue (jit-wrapped so every Pallas call is compiled once and cached)
# ----------------------------------------------------------------------------
def positional_encoding(T, d_model):
    position = np.arange(T, dtype=np.float32)[:, None]
    n_even = (d_model + 1) // 2
    n_odd = d_model // 2
    div_term = np.exp(np.arange(n_even, dtype=np.float32) * 2.0 *
                      -(np.log(10000.0) / d_model))
    pe = np.zeros((T, d_model), np.float32)
    pe[:, 0::2] = np.sin(position * div_term)
    pe[:, 1::2] = np.cos(position * div_term[:n_odd])
    return pe


@jax.jit
def _embed(x_p, token_w, pe):
    """DataEmbedding: circular Conv1d(k=3, bias=False) token embedding + PE."""
    B, T, Fp = x_p.shape
    patches = jnp.concatenate(
        [jnp.roll(x_p, 1, axis=1), x_p, jnp.roll(x_p, -1, axis=1)], axis=-1
    ).reshape(B * T, 3 * Fp)
    emb = fused_matmul(patches, token_w)            # no bias operand at all
    return emb.reshape(B, T, -1) + pe[None, :T, :]


def _inception_conv(x_nhwc, w_gemm, b, apply_gelu):
    """Folded InceptionBlockV1 = single same-padded Conv2d -> one fused GEMM."""
    # TODO(synk): review option (b) — in-kernel shifted-matmul conv on a
    # VMEM-resident tile — would remove the remaining ks^2 im2col HBM traffic.
    B, H, W, Cp = x_nhwc.shape
    ks = math.isqrt(w_gemm.shape[0] // Cp)
    pad = ks // 2
    xp = jnp.pad(x_nhwc, ((0, 0), (pad, pad), (pad, pad), (0, 0))) if pad else x_nhwc
    cols = [xp[:, kh:kh + H, kw:kw + W, :] for kh in range(ks) for kw in range(ks)]
    patches = jnp.concatenate(cols, axis=-1).reshape(B * H * W, ks * ks * Cp)
    y = fused_matmul(patches, w_gemm, bias=b, apply_gelu=apply_gelu)
    return y.reshape(B, H, W, -1)


@functools.partial(jax.jit, static_argnames=("period", "length", "t_real"))
def _period_branch(x, w1, b1, w2, b2, *, period, length, t_real):
    B, T, Dp = x.shape
    if length > T:
        x = jnp.concatenate([x, jnp.zeros((B, length - T, Dp), x.dtype)], axis=1)
    H, W = length // period, period
    y = x.reshape(B, H, W, Dp)                     # NHWC 2-D view of the series
    y = _inception_conv(y, w1, b1, apply_gelu=True)    # d_model -> d_ffn (+GELU fused)
    y = _inception_conv(y, w2, b2, apply_gelu=False)   # d_ffn  -> d_model
    return y.reshape(B, length, -1)[:, :t_real, :]


@functools.partial(jax.jit, static_argnames=("top_k", "d_real"))
def _fft_period(x, *, top_k, d_real):
    xf = jnp.fft.rfft(x, axis=1)
    amp = jnp.abs(xf)                              # channel-pad lanes are exactly 0
    freq = amp.mean(axis=0).sum(axis=-1) * (1.0 / d_real)
    freq = freq.at[0].set(0.0)
    _, top_idx = jax.lax.top_k(freq, top_k)
    amp_mean = amp.sum(axis=-1) * (1.0 / d_real)   # [B, n_freq]
    return top_idx, amp_mean


@functools.partial(jax.jit, static_argnames=("d_real",))
def _aggregate_ln(res_stack, period_weight, x, ln_g, ln_b, *, d_real):
    pw = jax.nn.softmax(period_weight, axis=1)     # [B, k]
    agg = jnp.einsum("kbtd,bk->btd", res_stack, pw)  # adaptive aggregation
    B, T, Dp = x.shape
    out = layer_norm_residual(agg.reshape(B * T, Dp), x.reshape(B * T, Dp),
                              ln_g, ln_b, d_real)
    return out.reshape(B, T, Dp)


@jax.jit
def _project_impute(enc, proj_w, proj_b, mask_p, x_p):
    B, T, Dp = enc.shape
    Fp = proj_w.shape[1]
    dec, imp = fused_matmul(enc.reshape(B * T, Dp), proj_w, proj_b,
                            mix=(mask_p.reshape(B * T, Fp),
                                 x_p.reshape(B * T, Fp)))
    return dec.reshape(B, T, Fp), imp.reshape(B, T, Fp)


def times_block(conv_params, x, top_k, d_real):
    B, T, Dp = x.shape
    top_idx_dev, amp_mean = _fft_period(x, top_k=top_k, d_real=d_real)
    # Host sync for the k integer period indices only — this mirrors the
    # `.detach().cpu().numpy()` in the PyTorch FFT_for_Period; the
    # data-dependent reshape below needs static periods.
    # TODO(synk): a fully device-side variant needs lax.switch over a
    # statically enumerated period set to make the whole forward jittable.
    top_idx = np.asarray(jax.device_get(top_idx_dev))
    period_weight = amp_mean[:, top_idx]           # [B, k]

    res = []
    for i in range(top_k):
        idx = max(int(top_idx[i]), 1)   # reference would divide by zero on idx==0
        period = T // idx
        length = T if T % period == 0 else (T // period + 1) * period
        res.append(_period_branch(x, conv_params["w1"], conv_params["b1"],
                                  conv_params["w2"], conv_params["b2"],
                                  period=period, length=length, t_real=T))
    return jnp.stack(res, axis=0), period_weight


def timesnet_forward(params, inputs, top_k, apply_nonstationary_norm=False):
    # TODO(synk): apply_nonstationary_norm=True (masked norm/denorm) not exercised.
    assert not apply_nonstationary_norm
    X, missing_mask = inputs["X"], inputs["missing_mask"]
    B, T, F = X.shape
    Fp, Dp = params["f_pad"], params["d_pad"]
    d_model = params["d_model"]

    X_p = jnp.pad(X.astype(jnp.float32), ((0, 0), (0, 0), (0, Fp - F)))
    mask_p = jnp.pad(missing_mask.astype(jnp.float32), ((0, 0), (0, 0), (0, Fp - F)))

    # DataEmbedding (dropout = identity in eval mode)
    enc = _embed(X_p, params["token_w"], params["pe"])

    # BackboneTimesNet: TimesBlock -> adaptive agg + residual + shared LayerNorm
    for blk in params["blocks"]:
        res_stack, pw = times_block(blk, enc, top_k, d_model)
        enc = _aggregate_ln(res_stack, pw, enc, params["ln_g"], params["ln_b"],
                            d_real=d_model)

    # projection Linear(d_model -> n_features) with fused imputation mask-mix
    dec_p, imp_p = _project_impute(enc, params["proj_w"], params["proj_b"],
                                   mask_p, X_p)
    dec = dec_p[:, :, :F]
    imputed = imp_p[:, :, :F]
    # eval mode: training_loss branch skipped (self.training == False)
    return {"imputed_data": imputed, "reconstruction": dec}


# ----------------------------------------------------------------------------
# Parameter init (torch-like layouts) and kernel-ready preparation
# ----------------------------------------------------------------------------
def init_params(key, n_features, d_model, d_ffn, n_layers, n_kernels):
    n_keys = 2 + 2 * n_layers * n_kernels
    kit = iter(jax.random.split(key, n_keys))

    def kaiming(k, shape, fan_in):
        return jax.random.normal(k, shape, jnp.float32) * np.sqrt(2.0 / fan_in)

    raw = {"token_w": kaiming(next(kit), (d_model, n_features, 3), 3 * n_features)}
    blocks = []
    for _ in range(n_layers):
        inc1, inc2 = [], []
        for i in range(n_kernels):
            ks = 2 * i + 1
            inc1.append((kaiming(next(kit), (d_ffn, d_model, ks, ks), d_model * ks * ks),
                         jnp.zeros((d_ffn,), jnp.float32)))
        for i in range(n_kernels):
            ks = 2 * i + 1
            inc2.append((kaiming(next(kit), (d_model, d_ffn, ks, ks), d_ffn * ks * ks),
                         jnp.zeros((d_model,), jnp.float32)))
        blocks.append({"inc1": inc1, "inc2": inc2})
    raw["blocks"] = blocks
    raw["ln_g"] = jnp.ones((d_model,), jnp.float32)   # shared LayerNorm (BackboneTimesNet)
    raw["ln_b"] = jnp.zeros((d_model,), jnp.float32)
    raw["proj_w"] = kaiming(next(kit), (n_features, d_model), d_model)  # torch [out,in]
    raw["proj_b"] = jnp.zeros((n_features,), jnp.float32)
    return raw


def _fold_inception(branches, cin, cout, cin_pad, cout_pad):
    """mean_i Conv2d(ks_i, pad=ks_i//2)(x) == Conv2d(ks_max) with averaged,
    centre-zero-padded weights (convolution is linear in its weights)."""
    ks_max = max(int(np.shape(w)[-1]) for w, _ in branches)
    w_acc = np.zeros((ks_max, ks_max, cin, cout), np.float32)
    b_acc = np.zeros((cout,), np.float32)
    for w, b in branches:
        w = np.asarray(w, np.float32)                 # [cout, cin, ks, ks]
        ks = w.shape[-1]
        off = (ks_max - ks) // 2
        w_acc[off:off + ks, off:off + ks] += np.transpose(w, (2, 3, 1, 0))
        b_acc += np.asarray(b, np.float32)
    n = float(len(branches))
    w_acc /= n
    b_acc /= n
    w_full = np.zeros((ks_max, ks_max, cin_pad, cout_pad), np.float32)
    w_full[:, :, :cin, :cout] = w_acc
    b_full = np.zeros((cout_pad,), np.float32)
    b_full[:cout] = b_acc
    w_gemm = jnp.asarray(w_full.reshape(ks_max * ks_max * cin_pad, cout_pad),
                         dtype=jnp.bfloat16)
    return w_gemm, jnp.asarray(b_full), ks_max


def prepare_params(raw, n_features, d_model, d_ffn, n_steps):
    Fp = _round_up(n_features, _LANE)
    Dp = _round_up(d_model, _LANE)
    Gp = _round_up(d_ffn, _LANE)

    # circular Conv1d(k=3, bias=False) token embedding -> GEMM weight [3*Fp, Dp]
    tw = np.transpose(np.asarray(raw["token_w"], np.float32), (2, 1, 0))  # [3,F,d]
    w_full = np.zeros((3, Fp, Dp), np.float32)
    w_full[:, :n_features, :d_model] = tw
    token_w = jnp.asarray(w_full.reshape(3 * Fp, Dp), dtype=jnp.bfloat16)

    blocks = []
    for blk in raw["blocks"]:
        w1, b1, _ = _fold_inception(blk["inc1"], d_model, d_ffn, Dp, Gp)
        w2, b2, _ = _fold_inception(blk["inc2"], d_ffn, d_model, Gp, Dp)
        blocks.append({"w1": w1, "b1": b1, "w2": w2, "b2": b2})

    ln_g = np.zeros((Dp,), np.float32)
    ln_g[:d_model] = np.asarray(raw["ln_g"], np.float32)
    ln_b = np.zeros((Dp,), np.float32)
    ln_b[:d_model] = np.asarray(raw["ln_b"], np.float32)

    pw = np.zeros((Dp, Fp), np.float32)
    pw[:d_model, :n_features] = np.asarray(raw["proj_w"], np.float32).T
    pb = np.zeros((Fp,), np.float32)
    pb[:n_features] = np.asarray(raw["proj_b"], np.float32)

    pe = np.zeros((n_steps, Dp), np.float32)
    pe[:, :d_model] = positional_encoding(n_steps, d_model)

    return {
        "token_w": token_w, "blocks": blocks,
        "ln_g": jnp.asarray(ln_g), "ln_b": jnp.asarray(ln_b),
        "proj_w": jnp.asarray(pw, dtype=jnp.bfloat16), "proj_b": jnp.asarray(pb),
        "pe": jnp.asarray(pe),
        "d_model": d_model, "n_features": n_features,
        "f_pad": Fp, "d_pad": Dp,
    }


if __name__ == "__main__":
    # small config: n_steps=16, n_features=4, d_model=d_ffn=32, 1 layer, top_k=2, 2 kernels
    B, T, F = 2, 16, 4
    d_model, d_ffn = 32, 32
    n_layers, top_k, n_kernels = 1, 2, 2

    key = jax.random.PRNGKey(0)
    k_params, k_x, k_m = jax.random.split(key, 3)
    raw = init_params(k_params, F, d_model, d_ffn, n_layers, n_kernels)
    params = prepare_params(raw, F, d_model, d_ffn, T)

    X = jax.random.normal(k_x, (B, T, F), jnp.float32)
    missing_mask = (jax.random.uniform(k_m, (B, T, F)) > 0.2).astype(jnp.float32)
    X = X * missing_mask  # zero-out missing values, as pypots preprocessing does

    out = timesnet_forward(params, {"X": X, "missing_mask": missing_mask}, top_k)
    jax.block_until_ready(out["imputed_data"])
    assert out["imputed_data"].shape == (B, T, F)
    assert out["reconstruction"].shape == (B, T, F)
    assert bool(jnp.all(jnp.isfinite(out["imputed_data"])))
    print("KERNEL_OK")
</pallas_src>

<mosaic_0001>
module attributes {stable_mosaic.version = 11 : i64} {
  func.func @kernel(%arg0: i32, %arg1: i32, %arg2: i32, %arg3: memref<32x384xbf16, #tpu.memory_space<vmem>>, %arg4: memref<384x128xbf16, #tpu.memory_space<vmem>>, %arg5: memref<32x128xf32, #tpu.memory_space<vmem>>, %arg6: memref<32x128xf32, #tpu.memory_space<vmem>>) attributes {dimension_semantics = [#tpu.dimension_semantics<parallel>, #tpu.dimension_semantics<parallel>, #tpu.dimension_semantics<arbitrary>], iteration_bounds = array<i64: 1, 1, 1>, scalar_prefetch = 0 : i64, scratch_operands = 1 : i64, tpu.core_type = #tpu.core_type<tc>, window_params = [{transform_indices = @transform_0, window_bounds = array<i64: 32, 384>}, {transform_indices = @transform_1, window_bounds = array<i64: 384, 128>}, {transform_indices = @transform_2, window_bounds = array<i64: 32, 128>}]} {
    %c0_i32 = arith.constant 0 : i32
    %0 = arith.cmpi eq, %arg2, %c0_i32 : i32
    %1 = arith.extui %0 : i1 to i32
    %c0_i32_0 = arith.constant 0 : i32
    %2 = arith.cmpi ne, %1, %c0_i32_0 : i32
    scf.if %2 {
      %cst_10 = arith.constant 0.000000e+00 : f32
      %12 = vector.broadcast %cst_10 : f32 to vector<32x128xf32>
      %c0_11 = arith.constant 0 : index
      %c0_12 = arith.constant 0 : index
      %13 = vector.load %arg6[%c0_11, %c0_12] : memref<32x128xf32, #tpu.memory_space<vmem>>, vector<32x128xf32>
      tpu.vector_store %arg6[%c0_11, %c0_12], %12 {strides = array<i32>} : memref<32x128xf32, #tpu.memory_space<vmem>>, vector<32x128xf32>,
    } else {
    }
    %c0 = arith.constant 0 : index
    %c0_1 = arith.constant 0 : index
    %3 = vector.load %arg6[%c0, %c0_1] : memref<32x128xf32, #tpu.memory_space<vmem>>, vector<32x128xf32>
    %c0_2 = arith.constant 0 : index
    %c0_3 = arith.constant 0 : index
    %4 = vector.load %arg3[%c0_2, %c0_3] : memref<32x384xbf16, #tpu.memory_space<vmem>>, vector<32x384xbf16>
    %c0_4 = arith.constant 0 : index
    %c0_5 = arith.constant 0 : index
    %5 = vector.load %arg4[%c0_4, %c0_5] : memref<384x128xbf16, #tpu.memory_space<vmem>>, vector<384x128xbf16>
    %cst = arith.constant dense<0.000000e+00> : vector<32x128xf32>
    %6 = tpu.matmul %4, %5, %cst {dimension_numbers = #tpu.dot_dimension_numbers<[1], [0], [0], [1], [0, 0, 1, 1], [], []>} : vector<32x384xbf16>, vector<384x128xbf16>, vector<32x128xf32> -> vector<32x128xf32>
    %7 = arith.addf %3, %6 : vector<32x128xf32>
    %c0_6 = arith.constant 0 : index
    %c0_7 = arith.constant 0 : index
    %8 = vector.load %arg6[%c0_6, %c0_7] : memref<32x128xf32, #tpu.memory_space<vmem>>, vector<32x128xf32>
    tpu.vector_store %arg6[%c0_6, %c0_7], %7 {strides = array<i32>} : memref<32x128xf32, #tpu.memory_space<vmem>>, vector<32x128xf32>,
    %c0_i32_8 = arith.constant 0 : i32
    %9 = arith.cmpi eq, %arg2, %c0_i32_8 : i32
    %10 = arith.extui %9 : i1 to i32
    %c0_i32_9 = arith.constant 0 : i32
    %11 = arith.cmpi ne, %10, %c0_i32_9 : i32
    scf.if %11 {
      %c0_10 = arith.constant 0 : index
      %c0_11 = arith.constant 0 : index
      %12 = vector.load %arg6[%c0_10, %c0_11] : memref<32x128xf32, #tpu.memory_space<vmem>>, vector<32x128xf32>
      %c0_12 = arith.constant 0 : index
      %c0_13 = arith.constant 0 : index
      %13 = vector.load %arg5[%c0_12, %c0_13] : memref<32x128xf32, #tpu.memory_space<vmem>>, vector<32x128xf32>
      tpu.vector_store %arg5[%c0_12, %c0_13], %12 {strides = array<i32>} : memref<32x128xf32, #tpu.memory_space<vmem>>, vector<32x128xf32>,
    } else {
    }
    return
  }
  func.func @transform_0(%arg0: i32, %arg1: i32, %arg2: i32) -> (i32, i32) {
    %c0_i32 = arith.constant 0 : i32
    return %arg0, %arg2 : i32, i32
  }
  func.func @transform_1(%arg0: i32, %arg1: i32, %arg2: i32) -> (i32, i32) {
    %c0_i32 = arith.constant 0 : i32
    return %arg2, %arg1 : i32, i32
  }
  func.func @transform_2(%arg0: i32, %arg1: i32, %arg2: i32) -> (i32, i32) {
    %c0_i32 = arith.constant 0 : i32
    return %arg0, %arg1 : i32, i32
  }
}

</mosaic_0001>

<llo_original>
// kernel: _embed.1
$region0: #{_embed.1}
  #allocation0 [shape = 'u32[]', space=smem, size = 0x4, offset = 0x4, fixed_abs, tag = 'smem constant byte address 0x4 - core index']
  #allocation1 [shape = 'u32[144,128]{1,0:T(1,128)}', space=vmem, size = 0x12000, scoped, tag = 'internal scratch']
  #allocation2 [shape = 'f32[32,128]{1,0:T(8,128)}', space=vmem, size = 0x4000, scoped, tag = 'scratch operand']
  %s0 = inlined_call_operand.vmem [shape: bf16[32,384], index: 0, kind: input, shape index: {}]
  %s1 = inlined_call_operand.vmem [shape: bf16[384,128], index: 1, kind: input, shape index: {}]
  %s2 = inlined_call_operand.vmem [shape: f32[32,128], index: 2, kind: output, shape index: {}]
  %s3 = sld [smem:[#allocation0]]
  $region26: #{_embed.1} parent=0
    _
  %s5 = ssub.s32 1, %s3
  %s6 = scalar_select 0, %s5, %s3
  // Predicated region
  $region2: #{_embed.1} parent=0 // pred_check
    _
  $region3: #{_embed.1} parent=0 // pred_check_branch
    %8 = sbr.rel (0) target = $region5
  $region4: #{_embed.1} parent=0 // pred_region
    _
  $region5: #{_embed.1} parent=0 // pred_fallthru
    _
  // Predicated region
  $region6: #{_embed.1} parent=0 // pred_check
    _
  $region7: #{_embed.1} parent=0 // pred_check_branch
    %10 = sbr.rel (0) target = $region9
  $region8: #{_embed.1} parent=0 // pred_region
    _
  $region9: #{_embed.1} parent=0 // pred_fallthru
    _
  %p12 = scmp.eq.s32.totalorder 0, 0
  // Predicated region
  $region10: #{_embed.1} parent=0 // pred_check
    %p13 = pneg %p12
  $region11: #{_embed.1} parent=0 // pred_check_branch
    %15 = sbr.rel (%p13) target = $region13
  $region12: #{_embed.1} parent=0 // pred_region
    %16 = vst [vmem:[#allocation2] sm:$0xff] 0.0
    %17 = vst [vmem:[#allocation2 + $0x8] sm:$0xff] 0.0
    %18 = vst [vmem:[#allocation2 + $0x10] sm:$0xff] 0.0
    %19 = vst [vmem:[#allocation2 + $0x18] sm:$0xff] 0.0
  $region13: #{_embed.1} parent=0 // pred_fallthru
    _
  %v20 = vld [vmem:[#allocation2] sm:$0xff]
  %v21 = vld [vmem:[#allocation2 + $0x8] sm:$0xff]
  %v22 = vld [vmem:[#allocation2 + $0x10] sm:$0xff]
  %v23 = vld [vmem:[#allocation2 + $0x18] sm:$0xff]
  %v24 = vld [vmem:[%s0] sm:$0xff]
  %v25 = vld [vmem:[%s0 + $0x8] sm:$0xf]
  %v26 = vld [vmem:[%s0 + $0xc] sm:$0xff]
  %v27 = vld [vmem:[%s0 + $0x14] sm:$0xf]
  %v28 = vld [vmem:[%s0 + $0x18] sm:$0xff]
  %v29 = vld [vmem:[%s0 + $0x20] sm:$0xf]
  %v30 = vld [vmem:[%s0 + $0x24] sm:$0xff]
  %v31 = vld [vmem:[%s0 + $0x2c] sm:$0xf]
  %v32 = vld [vmem:[%s1] sm:$0xf]
  %v33 = vld [vmem:[%s1 + $0x4] sm:$0xf]
  %v34 = vld [vmem:[%s1 + $0x8] sm:$0xf]
  %v35 = vld [vmem:[%s1 + $0xc] sm:$0xf]
  %v36 = vld [vmem:[%s1 + $0x10] sm:$0xf]
  %v37 = vld [vmem:[%s1 + $0x14] sm:$0xf]
  %v38 = vld [vmem:[%s1 + $0x18] sm:$0xf]
  %v39 = vld [vmem:[%s1 + $0x1c] sm:$0xf]
  %v40 = vld [vmem:[%s1 + $0x20] sm:$0xf]
  %v41 = vld [vmem:[%s1 + $0x24] sm:$0xf]
  %v42 = vld [vmem:[%s1 + $0x28] sm:$0xf]
  %v43 = vld [vmem:[%s1 + $0x2c] sm:$0xf]
  %v44 = vld [vmem:[%s1 + $0x30] sm:$0xf]
  %v45 = vld [vmem:[%s1 + $0x34] sm:$0xf]
  %v46 = vld [vmem:[%s1 + $0x38] sm:$0xf]
  %v47 = vld [vmem:[%s1 + $0x3c] sm:$0xf]
  %v48 = vld [vmem:[%s1 + $0x40] sm:$0xf]
  %v49 = vld [vmem:[%s1 + $0x44] sm:$0xf]
  %v50 = vld [vmem:[%s1 + $0x48] sm:$0xf]
  %v51 = vld [vmem:[%s1 + $0x4c] sm:$0xf]
  %v52 = vld [vmem:[%s1 + $0x50] sm:$0xf]
  %v53 = vld [vmem:[%s1 + $0x54] sm:$0xf]
  %v54 = vld [vmem:[%s1 + $0x58] sm:$0xf]
  %v55 = vld [vmem:[%s1 + $0x5c] sm:$0xf]
  %v56 = vld [vmem:[%s1 + $0x60] sm:$0xf]
  %v57 = vld [vmem:[%s1 + $0x64] sm:$0xf]
  %v58 = vld [vmem:[%s1 + $0x68] sm:$0xf]
  %v59 = vld [vmem:[%s1 + $0x6c] sm:$0xf]
  %v60 = vld [vmem:[%s1 + $0x70] sm:$0xf]
  %v61 = vld [vmem:[%s1 + $0x74] sm:$0xf]
  %v62 = vld [vmem:[%s1 + $0x78] sm:$0xf]
  %v63 = vld [vmem:[%s1 + $0x7c] sm:$0xf]
  %v64 = vld [vmem:[%s1 + $0x80] sm:$0xf]
  %v65 = vld [vmem:[%s1 + $0x84] sm:$0xf]
  %v66 = vld [vmem:[%s1 + $0x88] sm:$0xf]
  %v67 = vld [vmem:[%s1 + $0x8c] sm:$0xf]
  %v68 = vld [vmem:[%s1 + $0x90] sm:$0xf]
  %v69 = vld [vmem:[%s1 + $0x94] sm:$0xf]
  %v70 = vld [vmem:[%s1 + $0x98] sm:$0xf]
  %v71 = vld [vmem:[%s1 + $0x9c] sm:$0xf]
  %v72 = vld [vmem:[%s1 + $0xa0] sm:$0xf]
  %v73 = vld [vmem:[%s1 + $0xa4] sm:$0xf]
  %v74 = vld [vmem:[%s1 + $0xa8] sm:$0xf]
  %v75 = vld [vmem:[%s1 + $0xac] sm:$0xf]
  %v76 = vld [vmem:[%s1 + $0xb0] sm:$0xf]
  %v77 = vld [vmem:[%s1 + $0xb4] sm:$0xf]
  %v78 = vld [vmem:[%s1 + $0xb8] sm:$0xf]
  %v79 = vld [vmem:[%s1 + $0xbc] sm:$0xf]
  %v88 = vunpack.c.l.b16 %v24
  %v89 = vunpack.c.h.b16 %v24
  %v90 = vunpack.c.l.b16 %v25
  %v91 = vunpack.c.l.b16 %v26
  %v92 = vunpack.c.h.b16 %v26
  %v93 = vunpack.c.l.b16 %v27
  %v94 = vunpack.c.l.b16 %v28
  %v95 = vunpack.c.h.b16 %v28
  %v96 = vunpack.c.l.b16 %v29
  %v97 = vunpack.c.l.b16 %v30
  %v98 = vunpack.c.h.b16 %v30
  %v99 = vunpack.c.l.b16 %v31
  %v100 = vpack.c.b16 %v91, %v88
  %v101 = vpack.c.b16 %v92, %v89
  %v102 = vpack.c.b16 %v93, %v90
  %v103 = vpack.c.b16 %v97, %v94
  %v104 = vpack.c.b16 %v98, %v95
  %v105 = vpack.c.b16 %v99, %v96
  %v160 = vunpack.c.l.b16 %v32
  %v161 = vunpack.c.l.b16 %v33
  %v162 = vunpack.c.l.b16 %v34
  %v163 = vunpack.c.l.b16 %v35
  %v164 = vunpack.c.l.b16 %v36
  %v165 = vunpack.c.l.b16 %v37
  %v166 = vunpack.c.l.b16 %v38
  %v167 = vunpack.c.l.b16 %v39
  %v168 = vunpack.c.l.b16 %v40
  %v169 = vunpack.c.l.b16 %v41
  %v170 = vunpack.c.l.b16 %v42
  %v171 = vunpack.c.l.b16 %v43
  %v172 = vunpack.c.l.b16 %v44
  %v173 = vunpack.c.l.b16 %v45
  %v174 = vunpack.c.l.b16 %v46
  %v175 = vunpack.c.l.b16 %v47
  %v176 = vunpack.c.l.b16 %v48
  %v177 = vunpack.c.l.b16 %v49
  %v178 = vunpack.c.l.b16 %v50
  %v179 = vunpack.c.l.b16 %v51
  %v180 = vunpack.c.l.b16 %v52
  %v181 = vunpack.c.l.b16 %v53
  %v182 = vunpack.c.l.b16 %v54
  %v183 = vunpack.c.l.b16 %v55
  %v184 = vunpack.c.l.b16 %v56
  %v185 = vunpack.c.l.b16 %v57
  %v186 = vunpack.c.l.b16 %v58
  %v187 = vunpack.c.l.b16 %v59
  %v188 = vunpack.c.l.b16 %v60
  %v189 = vunpack.c.l.b16 %v61
  %v190 = vunpack.c.l.b16 %v62
  %v191 = vunpack.c.l.b16 %v63
  %v192 = vunpack.c.l.b16 %v64
  %v193 = vunpack.c.l.b16 %v65
  %v194 = vunpack.c.l.b16 %v66
  %v195 = vunpack.c.l.b16 %v67
  %v196 = vunpack.c.l.b16 %v68
  %v197 = vunpack.c.l.b16 %v69
  %v198 = vunpack.c.l.b16 %v70
  %v199 = vunpack.c.l.b16 %v71
  %v200 = vunpack.c.l.b16 %v72
  %v201 = vunpack.c.l.b16 %v73
  %v202 = vunpack.c.l.b16 %v74
  %v203 = vunpack.c.l.b16 %v75
  %v204 = vunpack.c.l.b16 %v76
  %v205 = vunpack.c.l.b16 %v77
  %v206 = vunpack.c.l.b16 %v78
  %v207 = vunpack.c.l.b16 %v79
  %v208 = vpack.c.b16 %v161, %v160
  %v209 = vpack.c.b16 %v163, %v162
  %v210 = vpack.c.b16 %v165, %v164
  %v211 = vpack.c.b16 %v167, %v166
  %v212 = vpack.c.b16 %v169, %v168
  %v213 = vpack.c.b16 %v171, %v170
  %v214 = vpack.c.b16 %v173, %v172
  %v215 = vpack.c.b16 %v175, %v174
  %v216 = vpack.c.b16 %v177, %v176
  %v217 = vpack.c.b16 %v179, %v178
  %v218 = vpack.c.b16 %v181, %v180
  %v219 = vpack.c.b16 %v183, %v182
  %v220 = vpack.c.b16 %v185, %v184
  %v221 = vpack.c.b16 %v187, %v186
  %v222 = vpack.c.b16 %v189, %v188
  %v223 = vpack.c.b16 %v191, %v190
  %v224 = vpack.c.b16 %v193, %v192
  %v225 = vpack.c.b16 %v195, %v194
  %v226 = vpack.c.b16 %v197, %v196
  %v227 = vpack.c.b16 %v199, %v198
  %v228 = vpack.c.b16 %v201, %v200
  %v229 = vpack.c.b16 %v203, %v202
  %v230 = vpack.c.b16 %v205, %v204
  %v231 = vpack.c.b16 %v207, %v206
  %256 = vmatprep.subr.bf16.mxu0 0
  %257 = vmatpush1.bf16.msra.mxu0 %v208
  %258 = vmatprep.subr.bf16.mxu0 0
  %259 = vmatpush1.bf16.msra.mxu0 %v209
  %260 = vmatprep.subr.bf16.mxu0 0
  %261 = vmatpush1.bf16.msra.mxu0 %v210
  %262 = vmatprep.subr.bf16.mxu0 0
  %263 = vmatpush1.bf16.msra.mxu0 %v211
  %264 = vmatprep.subr.bf16.mxu0 0
  %265 = vmatpush1.bf16.msra.mxu0 %v212
  %266 = vmatprep.subr.bf16.mxu0 0
  %267 = vmatpush1.bf16.msra.mxu0 %v213
  %268 = vmatprep.subr.bf16.mxu0 0
  %269 = vmatpush1.bf16.msra.mxu0 %v214
  %270 = vmatprep.subr.bf16.mxu0 0
  %271 = vmatpush1.bf16.msra.mxu0 %v215
  %272 = vmatprep.subr.bf16.mxu0 0
  %273 = vmatpush1.bf16.msra.mxu0 %v216
  %274 = vmatprep.subr.bf16.mxu0 0
  %275 = vmatpush1.bf16.msra.mxu0 %v217
  %276 = vmatprep.subr.bf16.mxu0 0
  %277 = vmatpush1.bf16.msra.mxu0 %v218
  %278 = vmatprep.subr.bf16.mxu0 0
  %279 = vmatpush1.bf16.msra.mxu0 %v219
  %280 = vmatprep.subr.bf16.mxu0 0
  %281 = vmatpush1.bf16.msra.mxu0 %v220
  %282 = vmatprep.subr.bf16.mxu0 0
  %283 = vmatpush1.bf16.msra.mxu0 %v221
  %284 = vmatprep.subr.bf16.mxu0 0
  %285 = vmatpush1.bf16.msra.mxu0 %v222
  %286 = vmatprep.subr.bf16.mxu0 0
  %287 = vmatpush1.bf16.msra.mxu0 %v223
  %288 = vmatprep.mubr.bf16.mxu0 %v101
  %289 = vmatmul.mubr.bf16.gmra.mrb[0].mxu0 %v100
  %v290 = vpop.f32.mrb[0].mxu0
  %v291 = vadd.f32 0.0, %v290
  %v292 = vpop.f32.mrb[0].mxu0
  %v293 = vpop.f32.mrb[0].mxu0
  %v294 = vadd.f32 0.0, %v293
  %v295 = vpop.f32.mrb[0].mxu0
  %296 = vmatprep.mubr.bf16.mxu0 %v104
  %297 = vmatmul.mubr.bf16.gmra.mrb[0].mxu0 %v103
  %v298 = vpop.f32.mrb[0].mxu0
  %v299 = vadd.f32 0.0, %v298
  %v300 = vpop.f32.mrb[0].mxu0
  %v301 = vpop.f32.mrb[0].mxu0
  %v302 = vadd.f32 0.0, %v301
  %v303 = vpop.f32.mrb[0].mxu0
  %304 = vdwg.mxu0
  %305 = vmatprep.subr.bf16.mxu0 0
  %306 = vmatpush1.bf16.msra.mxu0 %v224
  %307 = vmatprep.subr.bf16.mxu0 0
  %308 = vmatpush1.bf16.msra.mxu0 %v225
  %309 = vmatprep.subr.bf16.mxu0 0
  %310 = vmatpush1.bf16.msra.mxu0 %v226
  %311 = vmatprep.subr.bf16.mxu0 0
  %312 = vmatpush1.bf16.msra.mxu0 %v227
  %313 = vmatprep.subr.bf16.mxu0 0
  %314 = vmatpush1.bf16.msra.mxu0 %v228
  %315 = vmatprep.subr.bf16.mxu0 0
  %316 = vmatpush1.bf16.msra.mxu0 %v229
  %317 = vmatprep.subr.bf16.mxu0 0
  %318 = vmatpush1.bf16.msra.mxu0 %v230
  %319 = vmatprep.subr.bf16.mxu0 0
  %320 = vmatpush1.bf16.msra.mxu0 %v231
  %321 = vmatprep.subr.bf16.mxu0 0
  %322 = vmatpush1.bf16.msra.mxu0 0
  %323 = vmatprep.subr.bf16.mxu0 0
  %324 = vmatpush1.bf16.msra.mxu0 0
  %325 = vmatprep.subr.bf16.mxu0 0
  %326 = vmatpush1.bf16.msra.mxu0 0
  %327 = vmatprep.subr.bf16.mxu0 0
  %328 = vmatpush1.bf16.msra.mxu0 0
  %329 = vmatprep.subr.bf16.mxu0 0
  %330 = vmatpush1.bf16.msra.mxu0 0
  %331 = vmatprep.subr.bf16.mxu0 0
  %332 = vmatpush1.bf16.msra.mxu0 0
  %333 = vmatprep.subr.bf16.mxu0 0
  %334 = vmatpush1.bf16.msra.mxu0 0
  %335 = vmatprep.subr.bf16.mxu0 0
  %336 = vmatpush1.bf16.msra.mxu0 0
  %337 = vmatprep.mubr.bf16.mxu0 0
  %338 = vmatmul.mubr.bf16.gmra.mrb[0].mxu0 %v102
  %v339 = vpop.f32.mrb[0].mxu0
  %v340 = vadd.f32 %v291, %v339
  %v341 = vpop.f32.mrb[0].mxu0
  %v342 = vpop.f32.mrb[0].mxu0
  %v343 = vadd.f32 %v294, %v342
  %v344 = vpop.f32.mrb[0].mxu0
  %345 = vmatprep.mubr.bf16.mxu0 0
  %346 = vmatmul.mubr.bf16.gmra.mrb[0].mxu0 %v105
  %v347 = vpop.f32.mrb[0].mxu0
  %v348 = vadd.f32 %v299, %v347
  %v349 = vpop.f32.mrb[0].mxu0
  %v350 = vpop.f32.mrb[0].mxu0
  %v351 = vadd.f32 %v302, %v350
  %v352 = vpop.f32.mrb[0].mxu0
  %353 = vdwg.mxu0
  %v354 = vadd.f32 %v20, %v340
  %v355 = vadd.f32 %v21, %v343
  %v356 = vadd.f32 %v22, %v348
  %v357 = vadd.f32 %v23, %v351
  %358 = vst [vmem:[#allocation2] sm:$0xff] %v354
  %359 = vst [vmem:[#allocation2 + $0x8] sm:$0xff] %v355
  %360 = vst [vmem:[#allocation2 + $0x10] sm:$0xff] %v356
  %361 = vst [vmem:[#allocation2 + $0x18] sm:$0xff] %v357
  // Predicated region
  $region14: #{_embed.1} parent=0 // pred_check
    %p362 = pneg %p12
  $region15: #{_embed.1} parent=0 // pred_check_branch
    %364 = sbr.rel (%p362) target = $region17
  $region16: #{_embed.1} parent=0 // pred_region
    %v365 = vld [vmem:[#allocation2] sm:$0xff]
    %v366 = vld [vmem:[#allocation2 + $0x8] sm:$0xff]
    %v367 = vld [vmem:[#allocation2 + $0x10] sm:$0xff]
    %v368 = vld [vmem:[#allocation2 + $0x18] sm:$0xff]
    %369 = vst [vmem:[%s2] sm:$0xff] %v365
    %370 = vst [vmem:[%s2 + $0x8] sm:$0xff] %v366
    %371 = vst [vmem:[%s2 + $0x10] sm:$0xff] %v367
    %372 = vst [vmem:[%s2 + $0x18] sm:$0xff] %v368
  $region17: #{_embed.1} parent=0 // pred_fallthru
    _
  // Predicated region
  $region18: #{_embed.1} parent=0 // pred_check
    _
  $region19: #{_embed.1} parent=0 // pred_check_branch
    %374 = sbr.rel (0) target = $region21
  $region20: #{_embed.1} parent=0 // pred_region
    _
  $region21: #{_embed.1} parent=0 // pred_fallthru
    _
  // Predicated region
  $region22: #{_embed.1} parent=0 // pred_check
    _
  $region23: #{_embed.1} parent=0 // pred_check_branch
    %376 = sbr.rel (0) target = $region25
  $region24: #{_embed.1} parent=0 // pred_region
    _
  $region25: #{_embed.1} parent=0 // pred_fallthru
    _

</llo_original>
